<compile_context>
chip_gen: v7x
topology: tpu7x:2x2x1
jax: 0.10.0
libtpu: 0.0.40
codegen_flags: <defaults>
</compile_context>

<pallas_src>
import jax
import jax.numpy as jnp
from jax.experimental import pallas as pl
from jax.experimental.pallas import tpu as pltpu

HIDDEN = 256
OUT_F = 36
BN_EPS = 1e-5
N_BN = 4            # number of Linear->BN->ReLU blocks


def mlp_kernel(x_ref, w1_ref, wpack_ref, gbb_ref, o_ref):
    # x_ref     : (B, in)        f32
    # w1_ref    : (in, 256)      bf16
    # wpack_ref : (1024, 256)    bf16   rows [0:256)=w2, [256:512)=w3,
    #                                   [512:768)=w4, [768:1024)=w5 (cols 36.. zero)
    # gbb_ref   : (16, 256)      f32    rows 0..3 = gamma_i, 4..7 = beta_i,
    #                                   row 8 = b5 (cols 36.. zero), rest zero
    # o_ref     : (B, 256)       f32    (caller slices [:, :36])

    def bn_relu(z, i):
        # Fused training-mode BatchNorm + ReLU, one-pass (clamped) variance.
        mean = jnp.mean(z, axis=0, keepdims=True)
        var = jnp.maximum(jnp.mean(z * z, axis=0, keepdims=True) - mean * mean, 0.0)
        s = gbb_ref[i:i + 1, :] * jax.lax.rsqrt(var + BN_EPS)        # gamma * inv_std
        shift = gbb_ref[N_BN + i:N_BN + i + 1, :] - mean * s         # beta - mean*s
        return jnp.maximum(z * s + shift, 0.0).astype(jnp.bfloat16)

    # Layer 1: Linear (bias cancelled by BN) + BN + ReLU.
    z = jnp.dot(x_ref[...].astype(jnp.bfloat16), w1_ref[...],
                preferred_element_type=jnp.float32)
    h = bn_relu(z, 0)

    # Layers 2..4: static 256-row slices of the packed weight block.
    for i in range(1, N_BN):
        w = wpack_ref[(i - 1) * HIDDEN:i * HIDDEN, :]
        z = jnp.dot(h, w, preferred_element_type=jnp.float32)
        h = bn_relu(z, i)

    # Final Linear (padded to 256 lanes) + padded bias row.
    w5 = wpack_ref[(N_BN - 1) * HIDDEN:N_BN * HIDDEN, :]
    o_ref[...] = (jnp.dot(h, w5, preferred_element_type=jnp.float32)
                  + gbb_ref[2 * N_BN:2 * N_BN + 1, :])


def init_params(key, input_feature_num):
    """PyTorch-default-style init in f32: Linear uniform(+-1/sqrt(fan_in)),
    BatchNorm gamma=1 / beta=0. Weights stored as (in, out)."""
    dims = [(input_feature_num, HIDDEN), (HIDDEN, HIDDEN), (HIDDEN, HIDDEN),
            (HIDDEN, HIDDEN), (HIDDEN, OUT_F)]
    ws, bs = [], []
    for fin, fout in dims:
        key, kw, kb = jax.random.split(key, 3)
        bound = 1.0 / (float(fin) ** 0.5)
        ws.append(jax.random.uniform(kw, (fin, fout), jnp.float32, -bound, bound))
        bs.append(jax.random.uniform(kb, (1, fout), jnp.float32, -bound, bound))
    gammas = [jnp.ones((1, HIDDEN), jnp.float32) for _ in range(4)]
    betas = [jnp.zeros((1, HIDDEN), jnp.float32) for _ in range(4)]
    return {"ws": ws, "bs": bs, "gammas": gammas, "betas": betas}


def pack_kernel_params(p):
    """Consolidated kernel operands:
       w1    : (in, 256) bf16
       wpack : (1024, 256) bf16  = [w2; w3; w4; w5_padded]
       gbb   : (16, 256) f32     = [gamma0..3; beta0..3; b5_padded; zeros]
       Linear biases b1..b4 are intentionally dropped (cancelled by training BN)."""
    w1 = p["ws"][0].astype(jnp.bfloat16)
    w5_pad = jnp.zeros((HIDDEN, HIDDEN), jnp.float32).at[:, :OUT_F].set(p["ws"][4])
    wpack = jnp.concatenate(
        [p["ws"][1], p["ws"][2], p["ws"][3], w5_pad], axis=0).astype(jnp.bfloat16)
    b5_row = jnp.zeros((1, HIDDEN), jnp.float32).at[:, :OUT_F].set(p["bs"][4])
    gbb = jnp.concatenate(
        p["gammas"] + p["betas"] + [b5_row, jnp.zeros((7, HIDDEN), jnp.float32)],
        axis=0)                                                     # (16, 256)
    return [w1, wpack, gbb]


def neural_network_forward(x, kernel_params, slice_output=True):
    B = x.shape[0]
    in_f = x.shape[1]
    vmem_spec = pl.BlockSpec(memory_space=pltpu.MemorySpace.VMEM)

    flops = 2 * B * (in_f * HIDDEN + 4 * HIDDEN * HIDDEN)
    bytes_accessed = (x.size * 4
                      + sum(int(p.size) * p.dtype.itemsize for p in kernel_params)
                      + B * HIDDEN * 4)
    cost = pl.CostEstimate(flops=flops, transcendentals=N_BN * HIDDEN,
                           bytes_accessed=bytes_accessed)

    out_padded = pl.pallas_call(
        mlp_kernel,
        out_shape=jax.ShapeDtypeStruct((B, HIDDEN), jnp.float32),
        in_specs=[vmem_spec] * (1 + len(kernel_params)),
        out_specs=vmem_spec,
        compiler_params=pltpu.CompilerParams(vmem_limit_bytes=4 << 20),
        cost_estimate=cost,
    )(x, *kernel_params)
    # For a fused consumer, pass slice_output=False and slice lazily downstream.
    return out_padded[:, :OUT_F] if slice_output else out_padded


def reference_forward(x, p):
    """Pure-JAX reference using the original (un-fused) formulation INCLUDING the
    linear biases b1..b4, to validate that the kernel's bias-cancellation and
    fused BN scale/shift are exact. Weights cast to bf16 to match the kernel."""
    h = x.astype(jnp.float32)
    for li in range(4):
        w = p["ws"][li].astype(jnp.bfloat16)
        z = jnp.dot(h.astype(jnp.bfloat16), w,
                    preferred_element_type=jnp.float32) + p["bs"][li]
        m = jnp.mean(z, axis=0, keepdims=True)
        v = jnp.mean((z - m) ** 2, axis=0, keepdims=True)
        h = jnp.maximum((z - m) / jnp.sqrt(v + BN_EPS) * p["gammas"][li]
                        + p["betas"][li], 0.0)
    w5 = p["ws"][4].astype(jnp.bfloat16)
    return jnp.dot(h.astype(jnp.bfloat16), w5,
                   preferred_element_type=jnp.float32) + p["bs"][4]


if __name__ == "__main__":
    key = jax.random.PRNGKey(0)
    kx, kp = jax.random.split(key)

    batch = 8                 # training-mode BN needs B >= 2
    input_feature_num = 16
    x = jax.random.normal(kx, (batch, input_feature_num), jnp.float32)

    params = init_params(kp, input_feature_num)
    kernel_params = pack_kernel_params(params)

    out = neural_network_forward(x, kernel_params)
    out = jax.block_until_ready(out)

    ref = reference_forward(x, params)
    assert out.shape == (batch, OUT_F), out.shape
    assert jnp.allclose(out, ref, atol=1e-3, rtol=1e-3), "mismatch vs reference"

    print("KERNEL_OK")
</pallas_src>

<mosaic_0001>
module attributes {stable_mosaic.version = 11 : i64} {
  func.func @mlp_kernel(%arg0: memref<8x16xf32, #tpu.memory_space<vmem>>, %arg1: memref<16x256xbf16, #tpu.memory_space<vmem>>, %arg2: memref<1024x256xbf16, #tpu.memory_space<vmem>>, %arg3: memref<16x256xf32, #tpu.memory_space<vmem>>, %arg4: memref<8x256xf32, #tpu.memory_space<vmem>>) attributes {dimension_semantics = [], scalar_prefetch = 0 : i64, scratch_operands = 0 : i64, tpu.core_type = #tpu.core_type<tc>} {
    %c0 = arith.constant 0 : index
    %c0_0 = arith.constant 0 : index
    %0 = vector.load %arg0[%c0, %c0_0] : memref<8x16xf32, #tpu.memory_space<vmem>>, vector<8x16xf32>
    %1 = arith.truncf %0 : vector<8x16xf32> to vector<8x16xbf16>
    %c0_1 = arith.constant 0 : index
    %c0_2 = arith.constant 0 : index
    %2 = vector.load %arg1[%c0_1, %c0_2] : memref<16x256xbf16, #tpu.memory_space<vmem>>, vector<16x256xbf16>
    %cst = arith.constant dense<0.000000e+00> : vector<8x256xf32>
    %3 = tpu.matmul %1, %2, %cst {dimension_numbers = #tpu.dot_dimension_numbers<[1], [0], [0], [1], [0, 0, 1, 1], [], []>} : vector<8x16xbf16>, vector<16x256xbf16>, vector<8x256xf32> -> vector<8x256xf32>
    %cst_3 = arith.constant dense<0.000000e+00> : vector<256xf32>
    %4 = vector.multi_reduction <add>, %3, %cst_3 [0] : vector<8x256xf32> to vector<256xf32>
    %5 = vector.shape_cast %4 : vector<256xf32> to vector<1x256xf32>
    %cst_4 = arith.constant 8.000000e+00 : f32
    %6 = vector.broadcast %cst_4 : f32 to vector<1x256xf32>
    %7 = arith.divf %5, %6 : vector<1x256xf32>
    %8 = arith.mulf %3, %3 : vector<8x256xf32>
    %cst_5 = arith.constant dense<0.000000e+00> : vector<256xf32>
    %9 = vector.multi_reduction <add>, %8, %cst_5 [0] : vector<8x256xf32> to vector<256xf32>
    %10 = vector.shape_cast %9 : vector<256xf32> to vector<1x256xf32>
    %cst_6 = arith.constant 8.000000e+00 : f32
    %11 = vector.broadcast %cst_6 : f32 to vector<1x256xf32>
    %12 = arith.divf %10, %11 : vector<1x256xf32>
    %13 = arith.mulf %7, %7 : vector<1x256xf32>
    %14 = arith.subf %12, %13 : vector<1x256xf32>
    %cst_7 = arith.constant 0.000000e+00 : f32
    %15 = vector.broadcast %cst_7 : f32 to vector<1x256xf32>
    %16 = arith.maximumf %14, %15 : vector<1x256xf32>
    %c0_8 = arith.constant 0 : index
    %c0_9 = arith.constant 0 : index
    %17 = vector.load %arg3[%c0_8, %c0_9] : memref<16x256xf32, #tpu.memory_space<vmem>>, vector<1x256xf32>
    %cst_10 = arith.constant 9.99999974E-6 : f32
    %18 = vector.broadcast %cst_10 : f32 to vector<1x256xf32>
    %19 = arith.addf %16, %18 : vector<1x256xf32>
    %20 = math.rsqrt %19 : vector<1x256xf32>
    %21 = arith.mulf %17, %20 : vector<1x256xf32>
    %c4 = arith.constant 4 : index
    %c0_11 = arith.constant 0 : index
    %22 = vector.load %arg3[%c4, %c0_11] : memref<16x256xf32, #tpu.memory_space<vmem>>, vector<1x256xf32>
    %23 = arith.mulf %7, %21 : vector<1x256xf32>
    %24 = arith.subf %22, %23 : vector<1x256xf32>
    %25 = vector.broadcast %21 : vector<1x256xf32> to vector<8x256xf32>
    %26 = arith.mulf %3, %25 : vector<8x256xf32>
    %27 = vector.broadcast %24 : vector<1x256xf32> to vector<8x256xf32>
    %28 = arith.addf %26, %27 : vector<8x256xf32>
    %cst_12 = arith.constant 0.000000e+00 : f32
    %29 = vector.broadcast %cst_12 : f32 to vector<8x256xf32>
    %30 = arith.maximumf %28, %29 : vector<8x256xf32>
    %31 = arith.truncf %30 : vector<8x256xf32> to vector<8x256xbf16>
    %c0_13 = arith.constant 0 : index
    %c0_14 = arith.constant 0 : index
    %32 = vector.load %arg2[%c0_13, %c0_14] : memref<1024x256xbf16, #tpu.memory_space<vmem>>, vector<256x256xbf16>
    %cst_15 = arith.constant dense<0.000000e+00> : vector<8x256xf32>
    %33 = tpu.matmul %31, %32, %cst_15 {dimension_numbers = #tpu.dot_dimension_numbers<[1], [0], [0], [1], [0, 0, 1, 1], [], []>} : vector<8x256xbf16>, vector<256x256xbf16>, vector<8x256xf32> -> vector<8x256xf32>
    %cst_16 = arith.constant dense<0.000000e+00> : vector<256xf32>
    %34 = vector.multi_reduction <add>, %33, %cst_16 [0] : vector<8x256xf32> to vector<256xf32>
    %35 = vector.shape_cast %34 : vector<256xf32> to vector<1x256xf32>
    %cst_17 = arith.constant 8.000000e+00 : f32
    %36 = vector.broadcast %cst_17 : f32 to vector<1x256xf32>
    %37 = arith.divf %35, %36 : vector<1x256xf32>
    %38 = arith.mulf %33, %33 : vector<8x256xf32>
    %cst_18 = arith.constant dense<0.000000e+00> : vector<256xf32>
    %39 = vector.multi_reduction <add>, %38, %cst_18 [0] : vector<8x256xf32> to vector<256xf32>
    %40 = vector.shape_cast %39 : vector<256xf32> to vector<1x256xf32>
    %cst_19 = arith.constant 8.000000e+00 : f32
    %41 = vector.broadcast %cst_19 : f32 to vector<1x256xf32>
    %42 = arith.divf %40, %41 : vector<1x256xf32>
    %43 = arith.mulf %37, %37 : vector<1x256xf32>
    %44 = arith.subf %42, %43 : vector<1x256xf32>
    %cst_20 = arith.constant 0.000000e+00 : f32
    %45 = vector.broadcast %cst_20 : f32 to vector<1x256xf32>
    %46 = arith.maximumf %44, %45 : vector<1x256xf32>
    %c1 = arith.constant 1 : index
    %c0_21 = arith.constant 0 : index
    %47 = vector.load %arg3[%c1, %c0_21] : memref<16x256xf32, #tpu.memory_space<vmem>>, vector<1x256xf32>
    %cst_22 = arith.constant 9.99999974E-6 : f32
    %48 = vector.broadcast %cst_22 : f32 to vector<1x256xf32>
    %49 = arith.addf %46, %48 : vector<1x256xf32>
    %50 = math.rsqrt %49 : vector<1x256xf32>
    %51 = arith.mulf %47, %50 : vector<1x256xf32>
    %c5 = arith.constant 5 : index
    %c0_23 = arith.constant 0 : index
    %52 = vector.load %arg3[%c5, %c0_23] : memref<16x256xf32, #tpu.memory_space<vmem>>, vector<1x256xf32>
    %53 = arith.mulf %37, %51 : vector<1x256xf32>
    %54 = arith.subf %52, %53 : vector<1x256xf32>
    %55 = vector.broadcast %51 : vector<1x256xf32> to vector<8x256xf32>
    %56 = arith.mulf %33, %55 : vector<8x256xf32>
    %57 = vector.broadcast %54 : vector<1x256xf32> to vector<8x256xf32>
    %58 = arith.addf %56, %57 : vector<8x256xf32>
    %cst_24 = arith.constant 0.000000e+00 : f32
    %59 = vector.broadcast %cst_24 : f32 to vector<8x256xf32>
    %60 = arith.maximumf %58, %59 : vector<8x256xf32>
    %61 = arith.truncf %60 : vector<8x256xf32> to vector<8x256xbf16>
    %c256 = arith.constant 256 : index
    %c0_25 = arith.constant 0 : index
    %62 = vector.load %arg2[%c256, %c0_25] : memref<1024x256xbf16, #tpu.memory_space<vmem>>, vector<256x256xbf16>
    %cst_26 = arith.constant dense<0.000000e+00> : vector<8x256xf32>
    %63 = tpu.matmul %61, %62, %cst_26 {dimension_numbers = #tpu.dot_dimension_numbers<[1], [0], [0], [1], [0, 0, 1, 1], [], []>} : vector<8x256xbf16>, vector<256x256xbf16>, vector<8x256xf32> -> vector<8x256xf32>
    %cst_27 = arith.constant dense<0.000000e+00> : vector<256xf32>
    %64 = vector.multi_reduction <add>, %63, %cst_27 [0] : vector<8x256xf32> to vector<256xf32>
    %65 = vector.shape_cast %64 : vector<256xf32> to vector<1x256xf32>
    %cst_28 = arith.constant 8.000000e+00 : f32
    %66 = vector.broadcast %cst_28 : f32 to vector<1x256xf32>
    %67 = arith.divf %65, %66 : vector<1x256xf32>
    %68 = arith.mulf %63, %63 : vector<8x256xf32>
    %cst_29 = arith.constant dense<0.000000e+00> : vector<256xf32>
    %69 = vector.multi_reduction <add>, %68, %cst_29 [0] : vector<8x256xf32> to vector<256xf32>
    %70 = vector.shape_cast %69 : vector<256xf32> to vector<1x256xf32>
    %cst_30 = arith.constant 8.000000e+00 : f32
    %71 = vector.broadcast %cst_30 : f32 to vector<1x256xf32>
    %72 = arith.divf %70, %71 : vector<1x256xf32>
    %73 = arith.mulf %67, %67 : vector<1x256xf32>
    %74 = arith.subf %72, %73 : vector<1x256xf32>
    %cst_31 = arith.constant 0.000000e+00 : f32
    %75 = vector.broadcast %cst_31 : f32 to vector<1x256xf32>
    %76 = arith.maximumf %74, %75 : vector<1x256xf32>
    %c2 = arith.constant 2 : index
    %c0_32 = arith.constant 0 : index
    %77 = vector.load %arg3[%c2, %c0_32] : memref<16x256xf32, #tpu.memory_space<vmem>>, vector<1x256xf32>
    %cst_33 = arith.constant 9.99999974E-6 : f32
    %78 = vector.broadcast %cst_33 : f32 to vector<1x256xf32>
    %79 = arith.addf %76, %78 : vector<1x256xf32>
    %80 = math.rsqrt %79 : vector<1x256xf32>
    %81 = arith.mulf %77, %80 : vector<1x256xf32>
    %c6 = arith.constant 6 : index
    %c0_34 = arith.constant 0 : index
    %82 = vector.load %arg3[%c6, %c0_34] : memref<16x256xf32, #tpu.memory_space<vmem>>, vector<1x256xf32>
    %83 = arith.mulf %67, %81 : vector<1x256xf32>
    %84 = arith.subf %82, %83 : vector<1x256xf32>
    %85 = vector.broadcast %81 : vector<1x256xf32> to vector<8x256xf32>
    %86 = arith.mulf %63, %85 : vector<8x256xf32>
    %87 = vector.broadcast %84 : vector<1x256xf32> to vector<8x256xf32>
    %88 = arith.addf %86, %87 : vector<8x256xf32>
    %cst_35 = arith.constant 0.000000e+00 : f32
    %89 = vector.broadcast %cst_35 : f32 to vector<8x256xf32>
    %90 = arith.maximumf %88, %89 : vector<8x256xf32>
    %91 = arith.truncf %90 : vector<8x256xf32> to vector<8x256xbf16>
    %c512 = arith.constant 512 : index
    %c0_36 = arith.constant 0 : index
    %92 = vector.load %arg2[%c512, %c0_36] : memref<1024x256xbf16, #tpu.memory_space<vmem>>, vector<256x256xbf16>
    %cst_37 = arith.constant dense<0.000000e+00> : vector<8x256xf32>
    %93 = tpu.matmul %91, %92, %cst_37 {dimension_numbers = #tpu.dot_dimension_numbers<[1], [0], [0], [1], [0, 0, 1, 1], [], []>} : vector<8x256xbf16>, vector<256x256xbf16>, vector<8x256xf32> -> vector<8x256xf32>
    %cst_38 = arith.constant dense<0.000000e+00> : vector<256xf32>
    %94 = vector.multi_reduction <add>, %93, %cst_38 [0] : vector<8x256xf32> to vector<256xf32>
    %95 = vector.shape_cast %94 : vector<256xf32> to vector<1x256xf32>
    %cst_39 = arith.constant 8.000000e+00 : f32
    %96 = vector.broadcast %cst_39 : f32 to vector<1x256xf32>
    %97 = arith.divf %95, %96 : vector<1x256xf32>
    %98 = arith.mulf %93, %93 : vector<8x256xf32>
    %cst_40 = arith.constant dense<0.000000e+00> : vector<256xf32>
    %99 = vector.multi_reduction <add>, %98, %cst_40 [0] : vector<8x256xf32> to vector<256xf32>
    %100 = vector.shape_cast %99 : vector<256xf32> to vector<1x256xf32>
    %cst_41 = arith.constant 8.000000e+00 : f32
    %101 = vector.broadcast %cst_41 : f32 to vector<1x256xf32>
    %102 = arith.divf %100, %101 : vector<1x256xf32>
    %103 = arith.mulf %97, %97 : vector<1x256xf32>
    %104 = arith.subf %102, %103 : vector<1x256xf32>
    %cst_42 = arith.constant 0.000000e+00 : f32
    %105 = vector.broadcast %cst_42 : f32 to vector<1x256xf32>
    %106 = arith.maximumf %104, %105 : vector<1x256xf32>
    %c3 = arith.constant 3 : index
    %c0_43 = arith.constant 0 : index
    %107 = vector.load %arg3[%c3, %c0_43] : memref<16x256xf32, #tpu.memory_space<vmem>>, vector<1x256xf32>
    %cst_44 = arith.constant 9.99999974E-6 : f32
    %108 = vector.broadcast %cst_44 : f32 to vector<1x256xf32>
    %109 = arith.addf %106, %108 : vector<1x256xf32>
    %110 = math.rsqrt %109 : vector<1x256xf32>
    %111 = arith.mulf %107, %110 : vector<1x256xf32>
    %c7 = arith.constant 7 : index
    %c0_45 = arith.constant 0 : index
    %112 = vector.load %arg3[%c7, %c0_45] : memref<16x256xf32, #tpu.memory_space<vmem>>, vector<1x256xf32>
    %113 = arith.mulf %97, %111 : vector<1x256xf32>
    %114 = arith.subf %112, %113 : vector<1x256xf32>
    %115 = vector.broadcast %111 : vector<1x256xf32> to vector<8x256xf32>
    %116 = arith.mulf %93, %115 : vector<8x256xf32>
    %117 = vector.broadcast %114 : vector<1x256xf32> to vector<8x256xf32>
    %118 = arith.addf %116, %117 : vector<8x256xf32>
    %cst_46 = arith.constant 0.000000e+00 : f32
    %119 = vector.broadcast %cst_46 : f32 to vector<8x256xf32>
    %120 = arith.maximumf %118, %119 : vector<8x256xf32>
    %121 = arith.truncf %120 : vector<8x256xf32> to vector<8x256xbf16>
    %c768 = arith.constant 768 : index
    %c0_47 = arith.constant 0 : index
    %122 = vector.load %arg2[%c768, %c0_47] : memref<1024x256xbf16, #tpu.memory_space<vmem>>, vector<256x256xbf16>
    %cst_48 = arith.constant dense<0.000000e+00> : vector<8x256xf32>
    %123 = tpu.matmul %121, %122, %cst_48 {dimension_numbers = #tpu.dot_dimension_numbers<[1], [0], [0], [1], [0, 0, 1, 1], [], []>} : vector<8x256xbf16>, vector<256x256xbf16>, vector<8x256xf32> -> vector<8x256xf32>
    %c8 = arith.constant 8 : index
    %c0_49 = arith.constant 0 : index
    %124 = vector.load %arg3[%c8, %c0_49] : memref<16x256xf32, #tpu.memory_space<vmem>>, vector<1x256xf32>
    %125 = vector.broadcast %124 : vector<1x256xf32> to vector<8x256xf32>
    %126 = arith.addf %123, %125 : vector<8x256xf32>
    %c0_50 = arith.constant 0 : index
    %c0_51 = arith.constant 0 : index
    %127 = vector.load %arg4[%c0_50, %c0_51] : memref<8x256xf32, #tpu.memory_space<vmem>>, vector<8x256xf32>
    tpu.vector_store %arg4[%c0_50, %c0_51], %126 {strides = array<i32>} : memref<8x256xf32, #tpu.memory_space<vmem>>, vector<8x256xf32>,
    return
  }
}

</mosaic_0001>

<llo_original>
// kernel: tpu_custom_call.1
$region0: #{tpu_custom_call.1}
  #allocation0 [shape = 'u32[]', space=smem, size = 0x4, offset = 0x4, fixed_abs, tag = 'smem constant byte address 0x4 - core index']
  #allocation1 [shape = 'u32[144,128]{1,0:T(1,128)}', space=vmem, size = 0x12000, scoped, tag = 'internal scratch']
  %s0 = inlined_call_operand.hbm [shape: f32[8,16], index: 0, kind: input, shape index: {}]
  %s1 = inlined_call_operand.hbm [shape: bf16[16,256], index: 1, kind: input, shape index: {}]
  %s2 = inlined_call_operand.hbm [shape: bf16[1024,256], index: 2, kind: input, shape index: {}]
  %s3 = inlined_call_operand.hbm [shape: f32[16,256], index: 3, kind: input, shape index: {}]
  %s4 = inlined_call_operand.hbm [shape: f32[8,256], index: 4, kind: output, shape index: {}]
  %s5 = sld [smem:[#allocation0]]
  $region42: #{tpu_custom_call.1} parent=0
    _
  %s7 = ssub.s32 1, %s5
  %s8 = scalar_select 0, %s7, %s5
  $region1: #{tpu_custom_call.1} parent=0
    #allocation2 [shape = 'u8[4096]{0}', space=vmem, size = 0x1000, scoped, tag = 'input window, operand 0, single buffered']
    #allocation3 [shape = 's32[1]{0}', space=sflag, size = 0x4, scoped, tag = 'scoped memory for tpu_custom_call.1']
    #allocation4 [shape = 's32[1]{0}', space=sflag, size = 0x4, scoped, tag = 'scoped memory for tpu_custom_call.1']
    #allocation5 [shape = 'u8[8192]{0}', space=vmem, size = 0x2000, scoped, tag = 'input window, operand 1, single buffered']
    #allocation6 [shape = 's32[1]{0}', space=sflag, size = 0x4, scoped, tag = 'scoped memory for tpu_custom_call.1']
    #allocation7 [shape = 'u8[524288]{0}', space=vmem, size = 0x80000, scoped, tag = 'input window, operand 2, single buffered']
    #allocation8 [shape = 'u8[16384]{0}', space=vmem, size = 0x4000, scoped, tag = 'input window, operand 3, single buffered']
    #allocation9 [shape = 's32[1]{0}', space=sflag, size = 0x4, scoped, tag = 'scoped memory for tpu_custom_call.1']
    #allocation10 [shape = 'u8[8192]{0}', space=vmem, size = 0x2000, scoped, tag = 'output window, operand 0, single buffered']
    %9 = vsyncpa [#allocation3], 0
    %10 = vsyncpa [#allocation6], 0
    %11 = vsyncpa [#allocation9], 0
    %12 = vsyncpa [#allocation4], 0
    // Predicated region
    $region2: #{tpu_custom_call.1} parent=1 // pred_check
      _
    $region3: #{tpu_custom_call.1} parent=1 // pred_check_branch
      %14 = sbr.rel (0) target = $region5
    $region4: #{tpu_custom_call.1} parent=1 // pred_region
      %s16 = ssub.s32 128, 128
      %17 = vsyncadd [#allocation3], %s16
      %s19 = sshll.u32 [#allocation2], 4
      %s20 = int_to_ptr.vmem [resolvable:$true] %s19
      %22 = dma.hbm_to_vmem [thread:$0]  %s0, 128, %s20, [#allocation3]
    $region5: #{tpu_custom_call.1} parent=1 // pred_fallthru
      _
    // Predicated region
    $region6: #{tpu_custom_call.1} parent=1 // pred_check
      _
    $region7: #{tpu_custom_call.1} parent=1 // pred_check_branch
      %24 = sbr.rel (0) target = $region9
    $region8: #{tpu_custom_call.1} parent=1 // pred_region
      %s26 = ssub.s32 256, 256
      %27 = vsyncadd [#allocation6], %s26
      %s28 = sshll.u32 [#allocation5], 4
      %s29 = int_to_ptr.vmem [resolvable:$true] %s28
      %34 = dma.hbm_to_vmem [thread:$0]  %s1, 256, %s29, [#allocation6], 128, 128, 8
    $region9: #{tpu_custom_call.1} parent=1 // pred_fallthru
      _
    // Predicated region
    $region10: #{tpu_custom_call.1} parent=1 // pred_check
      _
    $region11: #{tpu_custom_call.1} parent=1 // pred_check_branch
      %36 = sbr.rel (0) target = $region13
    $region12: #{tpu_custom_call.1} parent=1 // pred_region
      %s38 = ssub.s32 16384, 16384
      %39 = vsyncadd [#allocation6], %s38
      %s40 = sshll.u32 [#allocation7], 4
      %s41 = int_to_ptr.vmem [resolvable:$true] %s40
      %46 = dma.hbm_to_vmem [thread:$0]  %s2, 16384, %s41, [#allocation6], 128, 128, 8
    $region13: #{tpu_custom_call.1} parent=1 // pred_fallthru
      _
    // Predicated region
    $region14: #{tpu_custom_call.1} parent=1 // pred_check
      _
    $region15: #{tpu_custom_call.1} parent=1 // pred_check_branch
      %48 = sbr.rel (0) target = $region17
    $region16: #{tpu_custom_call.1} parent=1 // pred_region
      %s50 = ssub.s32 512, 512
      %51 = vsyncadd [#allocation9], %s50
      %s52 = sshll.u32 [#allocation8], 4
      %s53 = int_to_ptr.vmem [resolvable:$true] %s52
      %58 = dma.hbm_to_vmem [thread:$0]  %s3, 512, %s53, [#allocation9], 256, 256, 16
    $region17: #{tpu_custom_call.1} parent=1 // pred_fallthru
      _
    // Predicated region
    $region18: #{tpu_custom_call.1} parent=1 // pred_check
      _
    $region19: #{tpu_custom_call.1} parent=1 // pred_check_branch
      %60 = sbr.rel (0) target = $region21
    $region20: #{tpu_custom_call.1} parent=1 // pred_region
      %61 = dma.done [#allocation3], 128
    $region21: #{tpu_custom_call.1} parent=1 // pred_fallthru
      _
    // Predicated region
    $region22: #{tpu_custom_call.1} parent=1 // pred_check
      _
    $region23: #{tpu_custom_call.1} parent=1 // pred_check_branch
      %63 = sbr.rel (0) target = $region25
    $region24: #{tpu_custom_call.1} parent=1 // pred_region
      %64 = dma.done [#allocation6], 256
    $region25: #{tpu_custom_call.1} parent=1 // pred_fallthru
      _
    // Predicated region
    $region26: #{tpu_custom_call.1} parent=1 // pred_check
      _
    $region27: #{tpu_custom_call.1} parent=1 // pred_check_branch
      %66 = sbr.rel (0) target = $region29
    $region28: #{tpu_custom_call.1} parent=1 // pred_region
      %67 = dma.done [#allocation6], 16384
    $region29: #{tpu_custom_call.1} parent=1 // pred_fallthru
      _
    // Predicated region
    $region30: #{tpu_custom_call.1} parent=1 // pred_check
      _
    $region31: #{tpu_custom_call.1} parent=1 // pred_check_branch
      %69 = sbr.rel (0) target = $region33
    $region32: #{tpu_custom_call.1} parent=1 // pred_region
      %70 = dma.done [#allocation9], 512
    $region33: #{tpu_custom_call.1} parent=1 // pred_fallthru
      _
    %v72 = vld [vmem:[#allocation2] sm:$0xff]
    %v73 = vpack.c.bf16 %v72, %v72
    %v74 = vld [vmem:[#allocation5] sm:$0xff]
    %v75 = vld [vmem:[#allocation5 + $0x8] sm:$0xff]
    %v78 = vunpack.c.l.b16 %v74
    %v79 = vunpack.c.h.b16 %v74
    %v80 = vunpack.c.l.b16 %v75
    %v81 = vunpack.c.h.b16 %v75
    %v82 = vpack.c.b16 %v80, %v78
    %v83 = vpack.c.b16 %v81, %v79
    %vm86 = vcmask 130048
    %v88 = vsel %vm86, %v73, 0
    %90 = vmatprep.subr.bf16.mxu0 %v83
    %91 = vmatpush1.bf16.msra.mxu0 %v82
    %92 = vmatprep.subr.bf16.mxu0 0
    %93 = vmatpush1.bf16.msra.mxu0 0
    %94 = vmatprep.subr.bf16.mxu0 0
    %95 = vmatpush1.bf16.msra.mxu0 0
    %96 = vmatprep.subr.bf16.mxu0 0
    %97 = vmatpush1.bf16.msra.mxu0 0
    %98 = vmatprep.subr.bf16.mxu0 0
    %99 = vmatpush1.bf16.msra.mxu0 0
    %100 = vmatprep.subr.bf16.mxu0 0
    %101 = vmatpush1.bf16.msra.mxu0 0
    %102 = vmatprep.subr.bf16.mxu0 0
    %103 = vmatpush1.bf16.msra.mxu0 0
    %104 = vmatprep.subr.bf16.mxu0 0
    %105 = vmatpush1.bf16.msra.mxu0 0
    %106 = vmatprep.subr.bf16.mxu0 0
    %107 = vmatpush1.bf16.msra.mxu0 0
    %108 = vmatprep.subr.bf16.mxu0 0
    %109 = vmatpush1.bf16.msra.mxu0 0
    %110 = vmatprep.subr.bf16.mxu0 0
    %111 = vmatpush1.bf16.msra.mxu0 0
    %112 = vmatprep.subr.bf16.mxu0 0
    %113 = vmatpush1.bf16.msra.mxu0 0
    %114 = vmatprep.subr.bf16.mxu0 0
    %115 = vmatpush1.bf16.msra.mxu0 0
    %116 = vmatprep.subr.bf16.mxu0 0
    %117 = vmatpush1.bf16.msra.mxu0 0
    %118 = vmatprep.subr.bf16.mxu0 0
    %119 = vmatpush1.bf16.msra.mxu0 0
    %120 = vmatprep.subr.bf16.mxu0 0
    %121 = vmatpush1.bf16.msra.mxu0 0
    %122 = vmatprep.mubr.bf16.mxu0 0
    %123 = vmatmul.mubr.bf16.gmra.mrb[0].mxu0 %v88
    %v124 = vpop.f32.mrb[0].mxu0
    %v125 = vadd.f32 0.0, %v124
    %v126 = vpop.f32.mrb[0].mxu0
    %v127 = vadd.f32 0.0, %v126
    %v128 = vpop.f32.mrb[0].mxu0
    %v129 = vpop.f32.mrb[0].mxu0
    %130 = vdwg.mxu0
    %v131 = vrot.slane %v125, 4
    %v132 = vadd.f32 %v125, %v131
    %v133 = vrot.slane %v132, 2
    %v134 = vadd.f32 %v132, %v133
    %v135 = vrot.slane %v134, 1
    %v136 = vadd.f32 %v134, %v135
    %v137 = vrot.slane %v127, 4
    %v138 = vadd.f32 %v127, %v137
    %v139 = vrot.slane %v138, 2
    %v140 = vadd.f32 %v138, %v139
    %v141 = vrot.slane %v140, 1
    %v142 = vadd.f32 %v140, %v141
    %v143 = vrcp.pop 8.0
    %v144 = vmul.f32 %v136, %v143
    %v145 = vmul.f32 %v142, %v143
    %v146 = vmul.f32 %v125, %v125
    %v147 = vmul.f32 %v127, %v127
    %v148 = vrot.slane %v146, 4
    %v149 = vadd.f32 %v146, %v148
    %v150 = vrot.slane %v149, 2
    %v151 = vadd.f32 %v149, %v150
    %v152 = vrot.slane %v151, 1
    %v153 = vadd.f32 %v151, %v152
    %v154 = vrot.slane %v147, 4
    %v155 = vadd.f32 %v147, %v154
    %v156 = vrot.slane %v155, 2
    %v157 = vadd.f32 %v155, %v156
    %v158 = vrot.slane %v157, 1
    %v159 = vadd.f32 %v157, %v158
    %v160 = vmul.f32 %v153, %v143
    %v161 = vmul.f32 %v159, %v143
    %v162 = vmul.f32 %v144, %v144
    %v163 = vmul.f32 %v145, %v145
    %v164 = vsub.f32 %v160, %v162
    %v165 = vsub.f32 %v161, %v163
    %v166 = vmax.f32 %v164, 0.0
    %v167 = vmax.f32 %v165, 0.0
    %v168 = vld [vmem:[#allocation8] ss:$8 sm:$0x3]
    %v169 = vadd.f32 %v166, 1e-05
    %v170 = vadd.f32 %v167, 1e-05
    %v171 = vrsqrt.pop %v169
    %v172 = vrsqrt.pop %v170
    %v175 = vcombine.low %v171, %v172
    %v177 = vunpack.c.l.s4 1966171168
    %v178 = vunpack.c.0.s8 %v177
    %v179 = vlaneseq
    %v180 = vshrl.u32 %v179, 7
    %v181 = vsub.s32 %v178, %v180
    %v182 = vrot.slane %v175, %v181
    %v184 = vunpack.c.l.s4 1966171168
    %v185 = vunpack.c.0.s8 %v184
    %v186 = vlaneseq
    %v187 = vshrl.u32 %v186, 7
    %v188 = vsub.s32 %v185, %v187
    %v189 = vrot.slane %v182, %v188
    %v191 = vmul.f32 %v168, %v189
    %s192 = scalar_lea.vmem [#allocation8], 4
    %v193 = vld [vmem:[%s192] ss:$8 sm:$0x3]
    %v195 = vlaneseq
    %v196 = vshrl.u32 %v195, 7
    %v197 = vsub.s32 0, %v196
    %v198 = vrot.slane %v191, %v197
    %v199 = vlaneseq
    %v200 = vshrl.u32 %v199, 7
    %v201 = vsub.s32 1, %v200
    %v202 = vrot.slane %v191, %v201
    %v205 = vmul.f32 %v144, %v198
    %v206 = vmul.f32 %v145, %v202
    %v209 = vcombine.low %v205, %v206
    %v211 = vunpack.c.l.s4 1966171168
    %v212 = vunpack.c.0.s8 %v211
    %v213 = vlaneseq
    %v214 = vshrl.u32 %v213, 7
    %v215 = vsub.s32 %v212, %v214
    %v216 = vrot.slane %v209, %v215
    %v218 = vunpack.c.l.s4 1966171168
    %v219 = vunpack.c.0.s8 %v218
    %v220 = vlaneseq
    %v221 = vshrl.u32 %v220, 7
    %v222 = vsub.s32 %v219, %v221
    %v223 = vrot.slane %v216, %v222
    %v225 = vsub.f32 %v193, %v223
    %v226 = vmul.f32 %v125, %v198
    %v227 = vmul.f32 %v127, %v202
    %v229 = vlaneseq
    %v230 = vshrl.u32 %v229, 7
    %v231 = vsub.s32 0, %v230
    %v232 = vrot.slane %v225, %v231
    %v233 = vlaneseq
    %v234 = vshrl.u32 %v233, 7
    %v235 = vsub.s32 1, %v234
    %v236 = vrot.slane %v225, %v235
    %v239 = vadd.f32 %v226, %v232
    %v240 = vadd.f32 %v227, %v236
    %v241 = vmax.f32 %v239, 0.0
    %v242 = vmax.f32 %v240, 0.0
    %v243 = vpack.c.bf16 %v241, %v241
    %v244 = vpack.c.bf16 %v242, %v242
    %v245 = vld [vmem:[#allocation7] sm:$0xff]
    %v246 = vld [vmem:[#allocation7 + $0x8] sm:$0xff]
    %v247 = vld [vmem:[#allocation7 + $0x10] sm:$0xff]
    %v248 = vld [vmem:[#allocation7 + $0x18] sm:$0xff]
    %v249 = vld [vmem:[#allocation7 + $0x20] sm:$0xff]
    %v250 = vld [vmem:[#allocation7 + $0x28] sm:$0xff]
    %v251 = vld [vmem:[#allocation7 + $0x30] sm:$0xff]
    %v252 = vld [vmem:[#allocation7 + $0x38] sm:$0xff]
    %v253 = vld [vmem:[#allocation7 + $0x40] sm:$0xff]
    %v254 = vld [vmem:[#allocation7 + $0x48] sm:$0xff]
    %v255 = vld [vmem:[#allocation7 + $0x50] sm:$0xff]
    %v256 = vld [vmem:[#allocation7 + $0x58] sm:$0xff]
    %v257 = vld [vmem:[#allocation7 + $0x60] sm:$0xff]
    %v258 = vld [vmem:[#allocation7 + $0x68] sm:$0xff]
    %v259 = vld [vmem:[#allocation7 + $0x70] sm:$0xff]
    %v260 = vld [vmem:[#allocation7 + $0x78] sm:$0xff]
    %v261 = vld [vmem:[#allocation7 + $0x80] sm:$0xff]
    %v262 = vld [vmem:[#allocation7 + $0x88] sm:$0xff]
    %v263 = vld [vmem:[#allocation7 + $0x90] sm:$0xff]
    %v264 = vld [vmem:[#allocation7 + $0x98] sm:$0xff]
    %v265 = vld [vmem:[#allocation7 + $0xa0] sm:$0xff]
    %v266 = vld [vmem:[#allocation7 + $0xa8] sm:$0xff]
    %v267 = vld [vmem:[#allocation7 + $0xb0] sm:$0xff]
    %v268 = vld [vmem:[#allocation7 + $0xb8] sm:$0xff]
    %v269 = vld [vmem:[#allocation7 + $0xc0] sm:$0xff]
    %v270 = vld [vmem:[#allocation7 + $0xc8] sm:$0xff]
    %v271 = vld [vmem:[#allocation7 + $0xd0] sm:$0xff]
    %v272 = vld [vmem:[#allocation7 + $0xd8] sm:$0xff]
    %v273 = vld [vmem:[#allocation7 + $0xe0] sm:$0xff]
    %v274 = vld [vmem:[#allocation7 + $0xe8] sm:$0xff]
    %v275 = vld [vmem:[#allocation7 + $0xf0] sm:$0xff]
    %v276 = vld [vmem:[#allocation7 + $0xf8] sm:$0xff]
    %v309 = vunpack.c.l.b16 %v245
    %v310 = vunpack.c.h.b16 %v245
    %v311 = vunpack.c.l.b16 %v246
    %v312 = vunpack.c.h.b16 %v246
    %v313 = vunpack.c.l.b16 %v247
    %v314 = vunpack.c.h.b16 %v247
    %v315 = vunpack.c.l.b16 %v248
    %v316 = vunpack.c.h.b16 %v248
    %v317 = vunpack.c.l.b16 %v249
    %v318 = vunpack.c.h.b16 %v249
    %v319 = vunpack.c.l.b16 %v250
    %v320 = vunpack.c.h.b16 %v250
    %v321 = vunpack.c.l.b16 %v251
    %v322 = vunpack.c.h.b16 %v251
    %v323 = vunpack.c.l.b16 %v252
    %v324 = vunpack.c.h.b16 %v252
    %v325 = vunpack.c.l.b16 %v253
    %v326 = vunpack.c.h.b16 %v253
    %v327 = vunpack.c.l.b16 %v254
    %v328 = vunpack.c.h.b16 %v254
    %v329 = vunpack.c.l.b16 %v255
    %v330 = vunpack.c.h.b16 %v255
    %v331 = vunpack.c.l.b16 %v256
    %v332 = vunpack.c.h.b16 %v256
    %v333 = vunpack.c.l.b16 %v257
    %v334 = vunpack.c.h.b16 %v257
    %v335 = vunpack.c.l.b16 %v258
    %v336 = vunpack.c.h.b16 %v258
    %v337 = vunpack.c.l.b16 %v259
    %v338 = vunpack.c.h.b16 %v259
    %v339 = vunpack.c.l.b16 %v260
    %v340 = vunpack.c.h.b16 %v260
    %v341 = vunpack.c.l.b16 %v261
    %v342 = vunpack.c.h.b16 %v261
    %v343 = vunpack.c.l.b16 %v262
    %v344 = vunpack.c.h.b16 %v262
    %v345 = vunpack.c.l.b16 %v263
    %v346 = vunpack.c.h.b16 %v263
    %v347 = vunpack.c.l.b16 %v264
    %v348 = vunpack.c.h.b16 %v264
    %v349 = vunpack.c.l.b16 %v265
    %v350 = vunpack.c.h.b16 %v265
    %v351 = vunpack.c.l.b16 %v266
    %v352 = vunpack.c.h.b16 %v266
    %v353 = vunpack.c.l.b16 %v267
    %v354 = vunpack.c.h.b16 %v267
    %v355 = vunpack.c.l.b16 %v268
    %v356 = vunpack.c.h.b16 %v268
    %v357 = vunpack.c.l.b16 %v269
    %v358 = vunpack.c.h.b16 %v269
    %v359 = vunpack.c.l.b16 %v270
    %v360 = vunpack.c.h.b16 %v270
    %v361 = vunpack.c.l.b16 %v271
    %v362 = vunpack.c.h.b16 %v271
    %v363 = vunpack.c.l.b16 %v272
    %v364 = vunpack.c.h.b16 %v272
    %v365 = vunpack.c.l.b16 %v273
    %v366 = vunpack.c.h.b16 %v273
    %v367 = vunpack.c.l.b16 %v274
    %v368 = vunpack.c.h.b16 %v274
    %v369 = vunpack.c.l.b16 %v275
    %v370 = vunpack.c.h.b16 %v275
    %v371 = vunpack.c.l.b16 %v276
    %v372 = vunpack.c.h.b16 %v276
    %v373 = vpack.c.b16 %v311, %v309
    %v374 = vpack.c.b16 %v312, %v310
    %v375 = vpack.c.b16 %v315, %v313
    %v376 = vpack.c.b16 %v316, %v314
    %v377 = vpack.c.b16 %v319, %v317
    %v378 = vpack.c.b16 %v320, %v318
    %v379 = vpack.c.b16 %v323, %v321
    %v380 = vpack.c.b16 %v324, %v322
    %v381 = vpack.c.b16 %v327, %v325
    %v382 = vpack.c.b16 %v328, %v326
    %v383 = vpack.c.b16 %v331, %v329
    %v384 = vpack.c.b16 %v332, %v330
    %v385 = vpack.c.b16 %v335, %v333
    %v386 = vpack.c.b16 %v336, %v334
    %v387 = vpack.c.b16 %v339, %v337
    %v388 = vpack.c.b16 %v340, %v338
    %v389 = vpack.c.b16 %v343, %v341
    %v390 = vpack.c.b16 %v344, %v342
    %v391 = vpack.c.b16 %v347, %v345
    %v392 = vpack.c.b16 %v348, %v346
    %v393 = vpack.c.b16 %v351, %v349
    %v394 = vpack.c.b16 %v352, %v350
    %v395 = vpack.c.b16 %v355, %v353
    %v396 = vpack.c.b16 %v356, %v354
    %v397 = vpack.c.b16 %v359, %v357
    %v398 = vpack.c.b16 %v360, %v358
    %v399 = vpack.c.b16 %v363, %v361
    %v400 = vpack.c.b16 %v364, %v362
    %v401 = vpack.c.b16 %v367, %v365
    %v402 = vpack.c.b16 %v368, %v366
    %v403 = vpack.c.b16 %v371, %v369
    %v404 = vpack.c.b16 %v372, %v370
    %437 = vmatprep.subr.bf16.mxu0 %v374
    %438 = vmatpush1.bf16.msra.mxu0 %v373
    %439 = vmatprep.subr.bf16.mxu0 %v376
    %440 = vmatpush1.bf16.msra.mxu0 %v375
    %441 = vmatprep.subr.bf16.mxu0 %v378
    %442 = vmatpush1.bf16.msra.mxu0 %v377
    %443 = vmatprep.subr.bf16.mxu0 %v380
    %444 = vmatpush1.bf16.msra.mxu0 %v379
    %445 = vmatprep.subr.bf16.mxu0 %v382
    %446 = vmatpush1.bf16.msra.mxu0 %v381
    %447 = vmatprep.subr.bf16.mxu0 %v384
    %448 = vmatpush1.bf16.msra.mxu0 %v383
    %449 = vmatprep.subr.bf16.mxu0 %v386
    %450 = vmatpush1.bf16.msra.mxu0 %v385
    %451 = vmatprep.subr.bf16.mxu0 %v388
    %452 = vmatpush1.bf16.msra.mxu0 %v387
    %453 = vmatprep.subr.bf16.mxu0 %v390
    %454 = vmatpush1.bf16.msra.mxu0 %v389
    %455 = vmatprep.subr.bf16.mxu0 %v392
    %456 = vmatpush1.bf16.msra.mxu0 %v391
    %457 = vmatprep.subr.bf16.mxu0 %v394
    %458 = vmatpush1.bf16.msra.mxu0 %v393
    %459 = vmatprep.subr.bf16.mxu0 %v396
    %460 = vmatpush1.bf16.msra.mxu0 %v395
    %461 = vmatprep.subr.bf16.mxu0 %v398
    %462 = vmatpush1.bf16.msra.mxu0 %v397
    %463 = vmatprep.subr.bf16.mxu0 %v400
    %464 = vmatpush1.bf16.msra.mxu0 %v399
    %465 = vmatprep.subr.bf16.mxu0 %v402
    %466 = vmatpush1.bf16.msra.mxu0 %v401
    %467 = vmatprep.subr.bf16.mxu0 %v404
    %468 = vmatpush1.bf16.msra.mxu0 %v403
    %469 = vmatprep.mubr.bf16.mxu0 %v244
    %470 = vmatmul.mubr.bf16.gmra.mrb[0].mxu0 %v243
    %v471 = vpop.f32.mrb[0].mxu0
    %v472 = vadd.f32 0.0, %v471
    %v473 = vpop.f32.mrb[0].mxu0
    %v474 = vadd.f32 0.0, %v473
    %v475 = vpop.f32.mrb[0].mxu0
    %v476 = vpop.f32.mrb[0].mxu0
    %477 = vdwg.mxu0
    %v478 = vrot.slane %v472, 4
    %v479 = vadd.f32 %v472, %v478
    %v480 = vrot.slane %v479, 2
    %v481 = vadd.f32 %v479, %v480
    %v482 = vrot.slane %v481, 1
    %v483 = vadd.f32 %v481, %v482
    %v484 = vrot.slane %v474, 4
    %v485 = vadd.f32 %v474, %v484
    %v486 = vrot.slane %v485, 2
    %v487 = vadd.f32 %v485, %v486
    %v488 = vrot.slane %v487, 1
    %v489 = vadd.f32 %v487, %v488
    %v490 = vmul.f32 %v483, %v143
    %v491 = vmul.f32 %v489, %v143
    %v492 = vmul.f32 %v472, %v472
    %v493 = vmul.f32 %v474, %v474
    %v494 = vrot.slane %v492, 4
    %v495 = vadd.f32 %v492, %v494
    %v496 = vrot.slane %v495, 2
    %v497 = vadd.f32 %v495, %v496
    %v498 = vrot.slane %v497, 1
    %v499 = vadd.f32 %v497, %v498
    %v500 = vrot.slane %v493, 4
    %v501 = vadd.f32 %v493, %v500
    %v502 = vrot.slane %v501, 2
    %v503 = vadd.f32 %v501, %v502
    %v504 = vrot.slane %v503, 1
    %v505 = vadd.f32 %v503, %v504
    %v506 = vmul.f32 %v499, %v143
    %v507 = vmul.f32 %v505, %v143
    %v508 = vmul.f32 %v490, %v490
    %v509 = vmul.f32 %v491, %v491
    %v510 = vsub.f32 %v506, %v508
    %v511 = vsub.f32 %v507, %v509
    %v512 = vmax.f32 %v510, 0.0
    %v513 = vmax.f32 %v511, 0.0
    %s514 = scalar_lea.vmem [#allocation8], 1
    %v515 = vld [vmem:[%s514] ss:$8 sm:$0x3]
    %v516 = vadd.f32 %v512, 1e-05
    %v517 = vadd.f32 %v513, 1e-05
    %v518 = vrsqrt.pop %v516
    %v519 = vrsqrt.pop %v517
    %v522 = vcombine.low %v518, %v519
    %v524 = vunpack.c.l.s4 1966171168
    %v525 = vunpack.c.0.s8 %v524
    %v526 = vlaneseq
    %v527 = vshrl.u32 %v526, 7
    %v528 = vsub.s32 %v525, %v527
    %v529 = vrot.slane %v522, %v528
    %v531 = vunpack.c.l.s4 1966171168
    %v532 = vunpack.c.0.s8 %v531
    %v533 = vlaneseq
    %v534 = vshrl.u32 %v533, 7
    %v535 = vsub.s32 %v532, %v534
    %v536 = vrot.slane %v529, %v535
    %v538 = vmul.f32 %v515, %v536
    %s539 = scalar_lea.vmem [#allocation8], 5
    %v540 = vld [vmem:[%s539] ss:$8 sm:$0x3]
    %v542 = vlaneseq
    %v543 = vshrl.u32 %v542, 7
    %v544 = vsub.s32 0, %v543
    %v545 = vrot.slane %v538, %v544
    %v546 = vlaneseq
    %v547 = vshrl.u32 %v546, 7
    %v548 = vsub.s32 1, %v547
    %v549 = vrot.slane %v538, %v548
    %v552 = vmul.f32 %v490, %v545
    %v553 = vmul.f32 %v491, %v549
    %v556 = vcombine.low %v552, %v553
    %v558 = vunpack.c.l.s4 1966171168
    %v559 = vunpack.c.0.s8 %v558
    %v560 = vlaneseq
    %v561 = vshrl.u32 %v560, 7
    %v562 = vsub.s32 %v559, %v561
    %v563 = vrot.slane %v556, %v562
    %v565 = vunpack.c.l.s4 1966171168
    %v566 = vunpack.c.0.s8 %v565
    %v567 = vlaneseq
    %v568 = vshrl.u32 %v567, 7
    %v569 = vsub.s32 %v566, %v568
    %v570 = vrot.slane %v563, %v569
    %v572 = vsub.f32 %v540, %v570
    %v573 = vmul.f32 %v472, %v545
    %v574 = vmul.f32 %v474, %v549
    %v576 = vlaneseq
    %v577 = vshrl.u32 %v576, 7
    %v578 = vsub.s32 0, %v577
    %v579 = vrot.slane %v572, %v578
    %v580 = vlaneseq
    %v581 = vshrl.u32 %v580, 7
    %v582 = vsub.s32 1, %v581
    %v583 = vrot.slane %v572, %v582
    %v586 = vadd.f32 %v573, %v579
    %v587 = vadd.f32 %v574, %v583
    %v588 = vmax.f32 %v586, 0.0
    %v589 = vmax.f32 %v587, 0.0
    %v590 = vpack.c.bf16 %v588, %v588
    %v591 = vpack.c.bf16 %v589, %v589
    %v592 = vld [vmem:[#allocation7 + $0x100] sm:$0xff]
    %v593 = vld [vmem:[#allocation7 + $0x108] sm:$0xff]
    %v594 = vld [vmem:[#allocation7 + $0x110] sm:$0xff]
    %v595 = vld [vmem:[#allocation7 + $0x118] sm:$0xff]
    %v596 = vld [vmem:[#allocation7 + $0x120] sm:$0xff]
    %v597 = vld [vmem:[#allocation7 + $0x128] sm:$0xff]
    %v598 = vld [vmem:[#allocation7 + $0x130] sm:$0xff]
    %v599 = vld [vmem:[#allocation7 + $0x138] sm:$0xff]
    %v600 = vld [vmem:[#allocation7 + $0x140] sm:$0xff]
    %v601 = vld [vmem:[#allocation7 + $0x148] sm:$0xff]
    %v602 = vld [vmem:[#allocation7 + $0x150] sm:$0xff]
    %v603 = vld [vmem:[#allocation7 + $0x158] sm:$0xff]
    %v604 = vld [vmem:[#allocation7 + $0x160] sm:$0xff]
    %v605 = vld [vmem:[#allocation7 + $0x168] sm:$0xff]
    %v606 = vld [vmem:[#allocation7 + $0x170] sm:$0xff]
    %v607 = vld [vmem:[#allocation7 + $0x178] sm:$0xff]
    %v608 = vld [vmem:[#allocation7 + $0x180] sm:$0xff]
    %v609 = vld [vmem:[#allocation7 + $0x188] sm:$0xff]
    %v610 = vld [vmem:[#allocation7 + $0x190] sm:$0xff]
    %v611 = vld [vmem:[#allocation7 + $0x198] sm:$0xff]
    %v612 = vld [vmem:[#allocation7 + $0x1a0] sm:$0xff]
    %v613 = vld [vmem:[#allocation7 + $0x1a8] sm:$0xff]
    %v614 = vld [vmem:[#allocation7 + $0x1b0] sm:$0xff]
    %v615 = vld [vmem:[#allocation7 + $0x1b8] sm:$0xff]
    %v616 = vld [vmem:[#allocation7 + $0x1c0] sm:$0xff]
    %v617 = vld [vmem:[#allocation7 + $0x1c8] sm:$0xff]
    %v618 = vld [vmem:[#allocation7 + $0x1d0] sm:$0xff]
    %v619 = vld [vmem:[#allocation7 + $0x1d8] sm:$0xff]
    %v620 = vld [vmem:[#allocation7 + $0x1e0] sm:$0xff]
    %v621 = vld [vmem:[#allocation7 + $0x1e8] sm:$0xff]
    %v622 = vld [vmem:[#allocation7 + $0x1f0] sm:$0xff]
    %v623 = vld [vmem:[#allocation7 + $0x1f8] sm:$0xff]
    %v656 = vunpack.c.l.b16 %v592
    %v657 = vunpack.c.h.b16 %v592
    %v658 = vunpack.c.l.b16 %v593
    %v659 = vunpack.c.h.b16 %v593
    %v660 = vunpack.c.l.b16 %v594
    %v661 = vunpack.c.h.b16 %v594
    %v662 = vunpack.c.l.b16 %v595
    %v663 = vunpack.c.h.b16 %v595
    %v664 = vunpack.c.l.b16 %v596
    %v665 = vunpack.c.h.b16 %v596
    %v666 = vunpack.c.l.b16 %v597
    %v667 = vunpack.c.h.b16 %v597
    %v668 = vunpack.c.l.b16 %v598
    %v669 = vunpack.c.h.b16 %v598
    %v670 = vunpack.c.l.b16 %v599
    %v671 = vunpack.c.h.b16 %v599
    %v672 = vunpack.c.l.b16 %v600
    %v673 = vunpack.c.h.b16 %v600
    %v674 = vunpack.c.l.b16 %v601
    %v675 = vunpack.c.h.b16 %v601
    %v676 = vunpack.c.l.b16 %v602
    %v677 = vunpack.c.h.b16 %v602
    %v678 = vunpack.c.l.b16 %v603
    %v679 = vunpack.c.h.b16 %v603
    %v680 = vunpack.c.l.b16 %v604
    %v681 = vunpack.c.h.b16 %v604
    %v682 = vunpack.c.l.b16 %v605
    %v683 = vunpack.c.h.b16 %v605
    %v684 = vunpack.c.l.b16 %v606
    %v685 = vunpack.c.h.b16 %v606
    %v686 = vunpack.c.l.b16 %v607
    %v687 = vunpack.c.h.b16 %v607
    %v688 = vunpack.c.l.b16 %v608
    %v689 = vunpack.c.h.b16 %v608
    %v690 = vunpack.c.l.b16 %v609
    %v691 = vunpack.c.h.b16 %v609
    %v692 = vunpack.c.l.b16 %v610
    %v693 = vunpack.c.h.b16 %v610
    %v694 = vunpack.c.l.b16 %v611
    %v695 = vunpack.c.h.b16 %v611
    %v696 = vunpack.c.l.b16 %v612
    %v697 = vunpack.c.h.b16 %v612
    %v698 = vunpack.c.l.b16 %v613
    %v699 = vunpack.c.h.b16 %v613
    %v700 = vunpack.c.l.b16 %v614
    %v701 = vunpack.c.h.b16 %v614
    %v702 = vunpack.c.l.b16 %v615
    %v703 = vunpack.c.h.b16 %v615
    %v704 = vunpack.c.l.b16 %v616
    %v705 = vunpack.c.h.b16 %v616
    %v706 = vunpack.c.l.b16 %v617
    %v707 = vunpack.c.h.b16 %v617
    %v708 = vunpack.c.l.b16 %v618
    %v709 = vunpack.c.h.b16 %v618
    %v710 = vunpack.c.l.b16 %v619
    %v711 = vunpack.c.h.b16 %v619
    %v712 = vunpack.c.l.b16 %v620
    %v713 = vunpack.c.h.b16 %v620
    %v714 = vunpack.c.l.b16 %v621
    %v715 = vunpack.c.h.b16 %v621
    %v716 = vunpack.c.l.b16 %v622
    %v717 = vunpack.c.h.b16 %v622
    %v718 = vunpack.c.l.b16 %v623
    %v719 = vunpack.c.h.b16 %v623
    %v720 = vpack.c.b16 %v658, %v656
    %v721 = vpack.c.b16 %v659, %v657
    %v722 = vpack.c.b16 %v662, %v660
    %v723 = vpack.c.b16 %v663, %v661
    %v724 = vpack.c.b16 %v666, %v664
    %v725 = vpack.c.b16 %v667, %v665
    %v726 = vpack.c.b16 %v670, %v668
    %v727 = vpack.c.b16 %v671, %v669
    %v728 = vpack.c.b16 %v674, %v672
    %v729 = vpack.c.b16 %v675, %v673
    %v730 = vpack.c.b16 %v678, %v676
    %v731 = vpack.c.b16 %v679, %v677
    %v732 = vpack.c.b16 %v682, %v680
    %v733 = vpack.c.b16 %v683, %v681
    %v734 = vpack.c.b16 %v686, %v684
    %v735 = vpack.c.b16 %v687, %v685
    %v736 = vpack.c.b16 %v690, %v688
    %v737 = vpack.c.b16 %v691, %v689
    %v738 = vpack.c.b16 %v694, %v692
    %v739 = vpack.c.b16 %v695, %v693
    %v740 = vpack.c.b16 %v698, %v696
    %v741 = vpack.c.b16 %v699, %v697
    %v742 = vpack.c.b16 %v702, %v700
    %v743 = vpack.c.b16 %v703, %v701
    %v744 = vpack.c.b16 %v706, %v704
    %v745 = vpack.c.b16 %v707, %v705
    %v746 = vpack.c.b16 %v710, %v708
    %v747 = vpack.c.b16 %v711, %v709
    %v748 = vpack.c.b16 %v714, %v712
    %v749 = vpack.c.b16 %v715, %v713
    %v750 = vpack.c.b16 %v718, %v716
    %v751 = vpack.c.b16 %v719, %v717
    %784 = vmatprep.subr.bf16.mxu0 %v721
    %785 = vmatpush1.bf16.msra.mxu0 %v720
    %786 = vmatprep.subr.bf16.mxu0 %v723
    %787 = vmatpush1.bf16.msra.mxu0 %v722
    %788 = vmatprep.subr.bf16.mxu0 %v725
    %789 = vmatpush1.bf16.msra.mxu0 %v724
    %790 = vmatprep.subr.bf16.mxu0 %v727
    %791 = vmatpush1.bf16.msra.mxu0 %v726
    %792 = vmatprep.subr.bf16.mxu0 %v729
    %793 = vmatpush1.bf16.msra.mxu0 %v728
    %794 = vmatprep.subr.bf16.mxu0 %v731
    %795 = vmatpush1.bf16.msra.mxu0 %v730
    %796 = vmatprep.subr.bf16.mxu0 %v733
    %797 = vmatpush1.bf16.msra.mxu0 %v732
    %798 = vmatprep.subr.bf16.mxu0 %v735
    %799 = vmatpush1.bf16.msra.mxu0 %v734
    %800 = vmatprep.subr.bf16.mxu0 %v737
    %801 = vmatpush1.bf16.msra.mxu0 %v736
    %802 = vmatprep.subr.bf16.mxu0 %v739
    %803 = vmatpush1.bf16.msra.mxu0 %v738
    %804 = vmatprep.subr.bf16.mxu0 %v741
    %805 = vmatpush1.bf16.msra.mxu0 %v740
    %806 = vmatprep.subr.bf16.mxu0 %v743
    %807 = vmatpush1.bf16.msra.mxu0 %v742
    %808 = vmatprep.subr.bf16.mxu0 %v745
    %809 = vmatpush1.bf16.msra.mxu0 %v744
    %810 = vmatprep.subr.bf16.mxu0 %v747
    %811 = vmatpush1.bf16.msra.mxu0 %v746
    %812 = vmatprep.subr.bf16.mxu0 %v749
    %813 = vmatpush1.bf16.msra.mxu0 %v748
    %814 = vmatprep.subr.bf16.mxu0 %v751
    %815 = vmatpush1.bf16.msra.mxu0 %v750
    %816 = vmatprep.mubr.bf16.mxu0 %v591
    %817 = vmatmul.mubr.bf16.gmra.mrb[0].mxu0 %v590
    %v818 = vpop.f32.mrb[0].mxu0
    %v819 = vadd.f32 0.0, %v818
    %v820 = vpop.f32.mrb[0].mxu0
    %v821 = vadd.f32 0.0, %v820
    %v822 = vpop.f32.mrb[0].mxu0
    %v823 = vpop.f32.mrb[0].mxu0
    %824 = vdwg.mxu0
    %v825 = vrot.slane %v819, 4
    %v826 = vadd.f32 %v819, %v825
    %v827 = vrot.slane %v826, 2
    %v828 = vadd.f32 %v826, %v827
    %v829 = vrot.slane %v828, 1
    %v830 = vadd.f32 %v828, %v829
    %v831 = vrot.slane %v821, 4
    %v832 = vadd.f32 %v821, %v831
    %v833 = vrot.slane %v832, 2
    %v834 = vadd.f32 %v832, %v833
    %v835 = vrot.slane %v834, 1
    %v836 = vadd.f32 %v834, %v835
    %v837 = vmul.f32 %v830, %v143
    %v838 = vmul.f32 %v836, %v143
    %v839 = vmul.f32 %v819, %v819
    %v840 = vmul.f32 %v821, %v821
    %v841 = vrot.slane %v839, 4
    %v842 = vadd.f32 %v839, %v841
    %v843 = vrot.slane %v842, 2
    %v844 = vadd.f32 %v842, %v843
    %v845 = vrot.slane %v844, 1
    %v846 = vadd.f32 %v844, %v845
    %v847 = vrot.slane %v840, 4
    %v848 = vadd.f32 %v840, %v847
    %v849 = vrot.slane %v848, 2
    %v850 = vadd.f32 %v848, %v849
    %v851 = vrot.slane %v850, 1
    %v852 = vadd.f32 %v850, %v851
    %v853 = vmul.f32 %v846, %v143
    %v854 = vmul.f32 %v852, %v143
    %v855 = vmul.f32 %v837, %v837
    %v856 = vmul.f32 %v838, %v838
    %v857 = vsub.f32 %v853, %v855
    %v858 = vsub.f32 %v854, %v856
    %v859 = vmax.f32 %v857, 0.0
    %v860 = vmax.f32 %v858, 0.0
    %s861 = scalar_lea.vmem [#allocation8], 2
    %v862 = vld [vmem:[%s861] ss:$8 sm:$0x3]
    %v863 = vadd.f32 %v859, 1e-05
    %v864 = vadd.f32 %v860, 1e-05
    %v865 = vrsqrt.pop %v863
    %v866 = vrsqrt.pop %v864
    %v869 = vcombine.low %v865, %v866
    %v871 = vunpack.c.l.s4 1966171168
    %v872 = vunpack.c.0.s8 %v871
    %v873 = vlaneseq
    %v874 = vshrl.u32 %v873, 7
    %v875 = vsub.s32 %v872, %v874
    %v876 = vrot.slane %v869, %v875
    %v878 = vunpack.c.l.s4 1966171168
    %v879 = vunpack.c.0.s8 %v878
    %v880 = vlaneseq
    %v881 = vshrl.u32 %v880, 7
    %v882 = vsub.s32 %v879, %v881
    %v883 = vrot.slane %v876, %v882
    %v885 = vmul.f32 %v862, %v883
    %s886 = scalar_lea.vmem [#allocation8], 6
    %v887 = vld [vmem:[%s886] ss:$8 sm:$0x3]
    %v889 = vlaneseq
    %v890 = vshrl.u32 %v889, 7
    %v891 = vsub.s32 0, %v890
    %v892 = vrot.slane %v885, %v891
    %v893 = vlaneseq
    %v894 = vshrl.u32 %v893, 7
    %v895 = vsub.s32 1, %v894
    %v896 = vrot.slane %v885, %v895
    %v899 = vmul.f32 %v837, %v892
    %v900 = vmul.f32 %v838, %v896
    %v903 = vcombine.low %v899, %v900
    %v905 = vunpack.c.l.s4 1966171168
    %v906 = vunpack.c.0.s8 %v905
    %v907 = vlaneseq
    %v908 = vshrl.u32 %v907, 7
    %v909 = vsub.s32 %v906, %v908
    %v910 = vrot.slane %v903, %v909
    %v912 = vunpack.c.l.s4 1966171168
    %v913 = vunpack.c.0.s8 %v912
    %v914 = vlaneseq
    %v915 = vshrl.u32 %v914, 7
    %v916 = vsub.s32 %v913, %v915
    %v917 = vrot.slane %v910, %v916
    %v919 = vsub.f32 %v887, %v917
    %v920 = vmul.f32 %v819, %v892
    %v921 = vmul.f32 %v821, %v896
    %v923 = vlaneseq
    %v924 = vshrl.u32 %v923, 7
    %v925 = vsub.s32 0, %v924
    %v926 = vrot.slane %v919, %v925
    %v927 = vlaneseq
    %v928 = vshrl.u32 %v927, 7
    %v929 = vsub.s32 1, %v928
    %v930 = vrot.slane %v919, %v929
    %v933 = vadd.f32 %v920, %v926
    %v934 = vadd.f32 %v921, %v930
    %v935 = vmax.f32 %v933, 0.0
    %v936 = vmax.f32 %v934, 0.0
    %v937 = vpack.c.bf16 %v935, %v935
    %v938 = vpack.c.bf16 %v936, %v936
    %v939 = vld [vmem:[#allocation7 + $0x200] sm:$0xff]
    %v940 = vld [vmem:[#allocation7 + $0x208] sm:$0xff]
    %v941 = vld [vmem:[#allocation7 + $0x210] sm:$0xff]
    %v942 = vld [vmem:[#allocation7 + $0x218] sm:$0xff]
    %v943 = vld [vmem:[#allocation7 + $0x220] sm:$0xff]
    %v944 = vld [vmem:[#allocation7 + $0x228] sm:$0xff]
    %v945 = vld [vmem:[#allocation7 + $0x230] sm:$0xff]
    %v946 = vld [vmem:[#allocation7 + $0x238] sm:$0xff]
    %v947 = vld [vmem:[#allocation7 + $0x240] sm:$0xff]
    %v948 = vld [vmem:[#allocation7 + $0x248] sm:$0xff]
    %v949 = vld [vmem:[#allocation7 + $0x250] sm:$0xff]
    %v950 = vld [vmem:[#allocation7 + $0x258] sm:$0xff]
    %v951 = vld [vmem:[#allocation7 + $0x260] sm:$0xff]
    %v952 = vld [vmem:[#allocation7 + $0x268] sm:$0xff]
    %v953 = vld [vmem:[#allocation7 + $0x270] sm:$0xff]
    %v954 = vld [vmem:[#allocation7 + $0x278] sm:$0xff]
    %v955 = vld [vmem:[#allocation7 + $0x280] sm:$0xff]
    %v956 = vld [vmem:[#allocation7 + $0x288] sm:$0xff]
    %v957 = vld [vmem:[#allocation7 + $0x290] sm:$0xff]
    %v958 = vld [vmem:[#allocation7 + $0x298] sm:$0xff]
    %v959 = vld [vmem:[#allocation7 + $0x2a0] sm:$0xff]
    %v960 = vld [vmem:[#allocation7 + $0x2a8] sm:$0xff]
    %v961 = vld [vmem:[#allocation7 + $0x2b0] sm:$0xff]
    %v962 = vld [vmem:[#allocation7 + $0x2b8] sm:$0xff]
    %v963 = vld [vmem:[#allocation7 + $0x2c0] sm:$0xff]
    %v964 = vld [vmem:[#allocation7 + $0x2c8] sm:$0xff]
    %v965 = vld [vmem:[#allocation7 + $0x2d0] sm:$0xff]
    %v966 = vld [vmem:[#allocation7 + $0x2d8] sm:$0xff]
    %v967 = vld [vmem:[#allocation7 + $0x2e0] sm:$0xff]
    %v968 = vld [vmem:[#allocation7 + $0x2e8] sm:$0xff]
    %v969 = vld [vmem:[#allocation7 + $0x2f0] sm:$0xff]
    %v970 = vld [vmem:[#allocation7 + $0x2f8] sm:$0xff]
    %v1003 = vunpack.c.l.b16 %v939
    %v1004 = vunpack.c.h.b16 %v939
    %v1005 = vunpack.c.l.b16 %v940
    %v1006 = vunpack.c.h.b16 %v940
    %v1007 = vunpack.c.l.b16 %v941
    %v1008 = vunpack.c.h.b16 %v941
    %v1009 = vunpack.c.l.b16 %v942
    %v1010 = vunpack.c.h.b16 %v942
    %v1011 = vunpack.c.l.b16 %v943
    %v1012 = vunpack.c.h.b16 %v943
    %v1013 = vunpack.c.l.b16 %v944
    %v1014 = vunpack.c.h.b16 %v944
    %v1015 = vunpack.c.l.b16 %v945
    %v1016 = vunpack.c.h.b16 %v945
    %v1017 = vunpack.c.l.b16 %v946
    %v1018 = vunpack.c.h.b16 %v946
    %v1019 = vunpack.c.l.b16 %v947
    %v1020 = vunpack.c.h.b16 %v947
    %v1021 = vunpack.c.l.b16 %v948
    %v1022 = vunpack.c.h.b16 %v948
    %v1023 = vunpack.c.l.b16 %v949
    %v1024 = vunpack.c.h.b16 %v949
    %v1025 = vunpack.c.l.b16 %v950
    %v1026 = vunpack.c.h.b16 %v950
    %v1027 = vunpack.c.l.b16 %v951
    %v1028 = vunpack.c.h.b16 %v951
    %v1029 = vunpack.c.l.b16 %v952
    %v1030 = vunpack.c.h.b16 %v952
    %v1031 = vunpack.c.l.b16 %v953
    %v1032 = vunpack.c.h.b16 %v953
    %v1033 = vunpack.c.l.b16 %v954
    %v1034 = vunpack.c.h.b16 %v954
    %v1035 = vunpack.c.l.b16 %v955
    %v1036 = vunpack.c.h.b16 %v955
    %v1037 = vunpack.c.l.b16 %v956
    %v1038 = vunpack.c.h.b16 %v956
    %v1039 = vunpack.c.l.b16 %v957
    %v1040 = vunpack.c.h.b16 %v957
    %v1041 = vunpack.c.l.b16 %v958
    %v1042 = vunpack.c.h.b16 %v958
    %v1043 = vunpack.c.l.b16 %v959
    %v1044 = vunpack.c.h.b16 %v959
    %v1045 = vunpack.c.l.b16 %v960
    %v1046 = vunpack.c.h.b16 %v960
    %v1047 = vunpack.c.l.b16 %v961
    %v1048 = vunpack.c.h.b16 %v961
    %v1049 = vunpack.c.l.b16 %v962
    %v1050 = vunpack.c.h.b16 %v962
    %v1051 = vunpack.c.l.b16 %v963
    %v1052 = vunpack.c.h.b16 %v963
    %v1053 = vunpack.c.l.b16 %v964
    %v1054 = vunpack.c.h.b16 %v964
    %v1055 = vunpack.c.l.b16 %v965
    %v1056 = vunpack.c.h.b16 %v965
    %v1057 = vunpack.c.l.b16 %v966
    %v1058 = vunpack.c.h.b16 %v966
    %v1059 = vunpack.c.l.b16 %v967
    %v1060 = vunpack.c.h.b16 %v967
    %v1061 = vunpack.c.l.b16 %v968
    %v1062 = vunpack.c.h.b16 %v968
    %v1063 = vunpack.c.l.b16 %v969
    %v1064 = vunpack.c.h.b16 %v969
    %v1065 = vunpack.c.l.b16 %v970
    %v1066 = vunpack.c.h.b16 %v970
    %v1067 = vpack.c.b16 %v1005, %v1003
    %v1068 = vpack.c.b16 %v1006, %v1004
    %v1069 = vpack.c.b16 %v1009, %v1007
    %v1070 = vpack.c.b16 %v1010, %v1008
    %v1071 = vpack.c.b16 %v1013, %v1011
    %v1072 = vpack.c.b16 %v1014, %v1012
    %v1073 = vpack.c.b16 %v1017, %v1015
    %v1074 = vpack.c.b16 %v1018, %v1016
    %v1075 = vpack.c.b16 %v1021, %v1019
    %v1076 = vpack.c.b16 %v1022, %v1020
    %v1077 = vpack.c.b16 %v1025, %v1023
    %v1078 = vpack.c.b16 %v1026, %v1024
    %v1079 = vpack.c.b16 %v1029, %v1027
    %v1080 = vpack.c.b16 %v1030, %v1028
    %v1081 = vpack.c.b16 %v1033, %v1031
    %v1082 = vpack.c.b16 %v1034, %v1032
    %v1083 = vpack.c.b16 %v1037, %v1035
    %v1084 = vpack.c.b16 %v1038, %v1036
    %v1085 = vpack.c.b16 %v1041, %v1039
    %v1086 = vpack.c.b16 %v1042, %v1040
    %v1087 = vpack.c.b16 %v1045, %v1043
    %v1088 = vpack.c.b16 %v1046, %v1044
    %v1089 = vpack.c.b16 %v1049, %v1047
    %v1090 = vpack.c.b16 %v1050, %v1048
    %v1091 = vpack.c.b16 %v1053, %v1051
    %v1092 = vpack.c.b16 %v1054, %v1052
    %v1093 = vpack.c.b16 %v1057, %v1055
    %v1094 = vpack.c.b16 %v1058, %v1056
    %v1095 = vpack.c.b16 %v1061, %v1059
    %v1096 = vpack.c.b16 %v1062, %v1060
    %v1097 = vpack.c.b16 %v1065, %v1063
    %v1098 = vpack.c.b16 %v1066, %v1064
    %1131 = vmatprep.subr.bf16.mxu0 %v1068
    %1132 = vmatpush1.bf16.msra.mxu0 %v1067
    %1133 = vmatprep.subr.bf16.mxu0 %v1070
    %1134 = vmatpush1.bf16.msra.mxu0 %v1069
    %1135 = vmatprep.subr.bf16.mxu0 %v1072
    %1136 = vmatpush1.bf16.msra.mxu0 %v1071
    %1137 = vmatprep.subr.bf16.mxu0 %v1074
    %1138 = vmatpush1.bf16.msra.mxu0 %v1073
    %1139 = vmatprep.subr.bf16.mxu0 %v1076
    %1140 = vmatpush1.bf16.msra.mxu0 %v1075
    %1141 = vmatprep.subr.bf16.mxu0 %v1078
    %1142 = vmatpush1.bf16.msra.mxu0 %v1077
    %1143 = vmatprep.subr.bf16.mxu0 %v1080
    %1144 = vmatpush1.bf16.msra.mxu0 %v1079
    %1145 = vmatprep.subr.bf16.mxu0 %v1082
    %1146 = vmatpush1.bf16.msra.mxu0 %v1081
    %1147 = vmatprep.subr.bf16.mxu0 %v1084
    %1148 = vmatpush1.bf16.msra.mxu0 %v1083
    %1149 = vmatprep.subr.bf16.mxu0 %v1086
    %1150 = vmatpush1.bf16.msra.mxu0 %v1085
    %1151 = vmatprep.subr.bf16.mxu0 %v1088
    %1152 = vmatpush1.bf16.msra.mxu0 %v1087
    %1153 = vmatprep.subr.bf16.mxu0 %v1090
    %1154 = vmatpush1.bf16.msra.mxu0 %v1089
    %1155 = vmatprep.subr.bf16.mxu0 %v1092
    %1156 = vmatpush1.bf16.msra.mxu0 %v1091
    %1157 = vmatprep.subr.bf16.mxu0 %v1094
    %1158 = vmatpush1.bf16.msra.mxu0 %v1093
    %1159 = vmatprep.subr.bf16.mxu0 %v1096
    %1160 = vmatpush1.bf16.msra.mxu0 %v1095
    %1161 = vmatprep.subr.bf16.mxu0 %v1098
    %1162 = vmatpush1.bf16.msra.mxu0 %v1097
    %1163 = vmatprep.mubr.bf16.mxu0 %v938
    %1164 = vmatmul.mubr.bf16.gmra.mrb[0].mxu0 %v937
    %v1165 = vpop.f32.mrb[0].mxu0
    %v1166 = vadd.f32 0.0, %v1165
    %v1167 = vpop.f32.mrb[0].mxu0
    %v1168 = vadd.f32 0.0, %v1167
    %v1169 = vpop.f32.mrb[0].mxu0
    %v1170 = vpop.f32.mrb[0].mxu0
    %1171 = vdwg.mxu0
    %v1172 = vrot.slane %v1166, 4
    %v1173 = vadd.f32 %v1166, %v1172
    %v1174 = vrot.slane %v1173, 2
    %v1175 = vadd.f32 %v1173, %v1174
    %v1176 = vrot.slane %v1175, 1
    %v1177 = vadd.f32 %v1175, %v1176
    %v1178 = vrot.slane %v1168, 4
    %v1179 = vadd.f32 %v1168, %v1178
    %v1180 = vrot.slane %v1179, 2
    %v1181 = vadd.f32 %v1179, %v1180
    %v1182 = vrot.slane %v1181, 1
    %v1183 = vadd.f32 %v1181, %v1182
    %v1184 = vmul.f32 %v1177, %v143
    %v1185 = vmul.f32 %v1183, %v143
    %v1186 = vmul.f32 %v1166, %v1166
    %v1187 = vmul.f32 %v1168, %v1168
    %v1188 = vrot.slane %v1186, 4
    %v1189 = vadd.f32 %v1186, %v1188
    %v1190 = vrot.slane %v1189, 2
    %v1191 = vadd.f32 %v1189, %v1190
    %v1192 = vrot.slane %v1191, 1
    %v1193 = vadd.f32 %v1191, %v1192
    %v1194 = vrot.slane %v1187, 4
    %v1195 = vadd.f32 %v1187, %v1194
    %v1196 = vrot.slane %v1195, 2
    %v1197 = vadd.f32 %v1195, %v1196
    %v1198 = vrot.slane %v1197, 1
    %v1199 = vadd.f32 %v1197, %v1198
    %v1200 = vmul.f32 %v1193, %v143
    %v1201 = vmul.f32 %v1199, %v143
    %v1202 = vmul.f32 %v1184, %v1184
    %v1203 = vmul.f32 %v1185, %v1185
    %v1204 = vsub.f32 %v1200, %v1202
    %v1205 = vsub.f32 %v1201, %v1203
    %v1206 = vmax.f32 %v1204, 0.0
    %v1207 = vmax.f32 %v1205, 0.0
    %s1208 = scalar_lea.vmem [#allocation8], 3
    %v1209 = vld [vmem:[%s1208] ss:$8 sm:$0x3]
    %v1210 = vadd.f32 %v1206, 1e-05
    %v1211 = vadd.f32 %v1207, 1e-05
    %v1212 = vrsqrt.pop %v1210
    %v1213 = vrsqrt.pop %v1211
    %v1216 = vcombine.low %v1212, %v1213
    %v1218 = vunpack.c.l.s4 1966171168
    %v1219 = vunpack.c.0.s8 %v1218
    %v1220 = vlaneseq
    %v1221 = vshrl.u32 %v1220, 7
    %v1222 = vsub.s32 %v1219, %v1221
    %v1223 = vrot.slane %v1216, %v1222
    %v1225 = vunpack.c.l.s4 1966171168
    %v1226 = vunpack.c.0.s8 %v1225
    %v1227 = vlaneseq
    %v1228 = vshrl.u32 %v1227, 7
    %v1229 = vsub.s32 %v1226, %v1228
    %v1230 = vrot.slane %v1223, %v1229
    %v1232 = vmul.f32 %v1209, %v1230
    %s1233 = scalar_lea.vmem [#allocation8], 7
    %v1234 = vld [vmem:[%s1233] ss:$8 sm:$0x3]
    %v1236 = vlaneseq
    %v1237 = vshrl.u32 %v1236, 7
    %v1238 = vsub.s32 0, %v1237
    %v1239 = vrot.slane %v1232, %v1238
    %v1240 = vlaneseq
    %v1241 = vshrl.u32 %v1240, 7
    %v1242 = vsub.s32 1, %v1241
    %v1243 = vrot.slane %v1232, %v1242
    %v1246 = vmul.f32 %v1184, %v1239
    %v1247 = vmul.f32 %v1185, %v1243
    %v1250 = vcombine.low %v1246, %v1247
    %v1252 = vunpack.c.l.s4 1966171168
    %v1253 = vunpack.c.0.s8 %v1252
    %v1254 = vlaneseq
    %v1255 = vshrl.u32 %v1254, 7
    %v1256 = vsub.s32 %v1253, %v1255
    %v1257 = vrot.slane %v1250, %v1256
    %v1259 = vunpack.c.l.s4 1966171168
    %v1260 = vunpack.c.0.s8 %v1259
    %v1261 = vlaneseq
    %v1262 = vshrl.u32 %v1261, 7
    %v1263 = vsub.s32 %v1260, %v1262
    %v1264 = vrot.slane %v1257, %v1263
    %v1266 = vsub.f32 %v1234, %v1264
    %v1267 = vmul.f32 %v1166, %v1239
    %v1268 = vmul.f32 %v1168, %v1243
    %v1270 = vlaneseq
    %v1271 = vshrl.u32 %v1270, 7
    %v1272 = vsub.s32 0, %v1271
    %v1273 = vrot.slane %v1266, %v1272
    %v1274 = vlaneseq
    %v1275 = vshrl.u32 %v1274, 7
    %v1276 = vsub.s32 1, %v1275
    %v1277 = vrot.slane %v1266, %v1276
    %v1280 = vadd.f32 %v1267, %v1273
    %v1281 = vadd.f32 %v1268, %v1277
    %v1282 = vmax.f32 %v1280, 0.0
    %v1283 = vmax.f32 %v1281, 0.0
    %v1284 = vpack.c.bf16 %v1282, %v1282
    %v1285 = vpack.c.bf16 %v1283, %v1283
    %v1286 = vld [vmem:[#allocation7 + $0x300] sm:$0xff]
    %v1287 = vld [vmem:[#allocation7 + $0x308] sm:$0xff]
    %v1288 = vld [vmem:[#allocation7 + $0x310] sm:$0xff]
    %v1289 = vld [vmem:[#allocation7 + $0x318] sm:$0xff]
    %v1290 = vld [vmem:[#allocation7 + $0x320] sm:$0xff]
    %v1291 = vld [vmem:[#allocation7 + $0x328] sm:$0xff]
    %v1292 = vld [vmem:[#allocation7 + $0x330] sm:$0xff]
    %v1293 = vld [vmem:[#allocation7 + $0x338] sm:$0xff]
    %v1294 = vld [vmem:[#allocation7 + $0x340] sm:$0xff]
    %v1295 = vld [vmem:[#allocation7 + $0x348] sm:$0xff]
    %v1296 = vld [vmem:[#allocation7 + $0x350] sm:$0xff]
    %v1297 = vld [vmem:[#allocation7 + $0x358] sm:$0xff]
    %v1298 = vld [vmem:[#allocation7 + $0x360] sm:$0xff]
    %v1299 = vld [vmem:[#allocation7 + $0x368] sm:$0xff]
    %v1300 = vld [vmem:[#allocation7 + $0x370] sm:$0xff]
    %v1301 = vld [vmem:[#allocation7 + $0x378] sm:$0xff]
    %v1302 = vld [vmem:[#allocation7 + $0x380] sm:$0xff]
    %v1303 = vld [vmem:[#allocation7 + $0x388] sm:$0xff]
    %v1304 = vld [vmem:[#allocation7 + $0x390] sm:$0xff]
    %v1305 = vld [vmem:[#allocation7 + $0x398] sm:$0xff]
    %v1306 = vld [vmem:[#allocation7 + $0x3a0] sm:$0xff]
    %v1307 = vld [vmem:[#allocation7 + $0x3a8] sm:$0xff]
    %v1308 = vld [vmem:[#allocation7 + $0x3b0] sm:$0xff]
    %v1309 = vld [vmem:[#allocation7 + $0x3b8] sm:$0xff]
    %v1310 = vld [vmem:[#allocation7 + $0x3c0] sm:$0xff]
    %v1311 = vld [vmem:[#allocation7 + $0x3c8] sm:$0xff]
    %v1312 = vld [vmem:[#allocation7 + $0x3d0] sm:$0xff]
    %v1313 = vld [vmem:[#allocation7 + $0x3d8] sm:$0xff]
    %v1314 = vld [vmem:[#allocation7 + $0x3e0] sm:$0xff]
    %v1315 = vld [vmem:[#allocation7 + $0x3e8] sm:$0xff]
    %v1316 = vld [vmem:[#allocation7 + $0x3f0] sm:$0xff]
    %v1317 = vld [vmem:[#allocation7 + $0x3f8] sm:$0xff]
    %s1318 = scalar_lea.vmem [#allocation8], 16
    %v1319 = vld [vmem:[%s1318] ss:$8 sm:$0x3]
    %v1321 = vlaneseq
    %v1322 = vshrl.u32 %v1321, 7
    %v1323 = vsub.s32 0, %v1322
    %v1324 = vrot.slane %v1319, %v1323
    %v1325 = vlaneseq
    %v1326 = vshrl.u32 %v1325, 7
    %v1327 = vsub.s32 1, %v1326
    %v1328 = vrot.slane %v1319, %v1327
    %v1363 = vunpack.c.l.b16 %v1286
    %v1364 = vunpack.c.h.b16 %v1286
    %v1365 = vunpack.c.l.b16 %v1287
    %v1366 = vunpack.c.h.b16 %v1287
    %v1367 = vunpack.c.l.b16 %v1288
    %v1368 = vunpack.c.h.b16 %v1288
    %v1369 = vunpack.c.l.b16 %v1289
    %v1370 = vunpack.c.h.b16 %v1289
    %v1371 = vunpack.c.l.b16 %v1290
    %v1372 = vunpack.c.h.b16 %v1290
    %v1373 = vunpack.c.l.b16 %v1291
    %v1374 = vunpack.c.h.b16 %v1291
    %v1375 = vunpack.c.l.b16 %v1292
    %v1376 = vunpack.c.h.b16 %v1292
    %v1377 = vunpack.c.l.b16 %v1293
    %v1378 = vunpack.c.h.b16 %v1293
    %v1379 = vunpack.c.l.b16 %v1294
    %v1380 = vunpack.c.h.b16 %v1294
    %v1381 = vunpack.c.l.b16 %v1295
    %v1382 = vunpack.c.h.b16 %v1295
    %v1383 = vunpack.c.l.b16 %v1296
    %v1384 = vunpack.c.h.b16 %v1296
    %v1385 = vunpack.c.l.b16 %v1297
    %v1386 = vunpack.c.h.b16 %v1297
    %v1387 = vunpack.c.l.b16 %v1298
    %v1388 = vunpack.c.h.b16 %v1298
    %v1389 = vunpack.c.l.b16 %v1299
    %v1390 = vunpack.c.h.b16 %v1299
    %v1391 = vunpack.c.l.b16 %v1300
    %v1392 = vunpack.c.h.b16 %v1300
    %v1393 = vunpack.c.l.b16 %v1301
    %v1394 = vunpack.c.h.b16 %v1301
    %v1395 = vunpack.c.l.b16 %v1302
    %v1396 = vunpack.c.h.b16 %v1302
    %v1397 = vunpack.c.l.b16 %v1303
    %v1398 = vunpack.c.h.b16 %v1303
    %v1399 = vunpack.c.l.b16 %v1304
    %v1400 = vunpack.c.h.b16 %v1304
    %v1401 = vunpack.c.l.b16 %v1305
    %v1402 = vunpack.c.h.b16 %v1305
    %v1403 = vunpack.c.l.b16 %v1306
    %v1404 = vunpack.c.h.b16 %v1306
    %v1405 = vunpack.c.l.b16 %v1307
    %v1406 = vunpack.c.h.b16 %v1307
    %v1407 = vunpack.c.l.b16 %v1308
    %v1408 = vunpack.c.h.b16 %v1308
    %v1409 = vunpack.c.l.b16 %v1309
    %v1410 = vunpack.c.h.b16 %v1309
    %v1411 = vunpack.c.l.b16 %v1310
    %v1412 = vunpack.c.h.b16 %v1310
    %v1413 = vunpack.c.l.b16 %v1311
    %v1414 = vunpack.c.h.b16 %v1311
    %v1415 = vunpack.c.l.b16 %v1312
    %v1416 = vunpack.c.h.b16 %v1312
    %v1417 = vunpack.c.l.b16 %v1313
    %v1418 = vunpack.c.h.b16 %v1313
    %v1419 = vunpack.c.l.b16 %v1314
    %v1420 = vunpack.c.h.b16 %v1314
    %v1421 = vunpack.c.l.b16 %v1315
    %v1422 = vunpack.c.h.b16 %v1315
    %v1423 = vunpack.c.l.b16 %v1316
    %v1424 = vunpack.c.h.b16 %v1316
    %v1425 = vunpack.c.l.b16 %v1317
    %v1426 = vunpack.c.h.b16 %v1317
    %v1427 = vpack.c.b16 %v1365, %v1363
    %v1428 = vpack.c.b16 %v1366, %v1364
    %v1429 = vpack.c.b16 %v1369, %v1367
    %v1430 = vpack.c.b16 %v1370, %v1368
    %v1431 = vpack.c.b16 %v1373, %v1371
    %v1432 = vpack.c.b16 %v1374, %v1372
    %v1433 = vpack.c.b16 %v1377, %v1375
    %v1434 = vpack.c.b16 %v1378, %v1376
    %v1435 = vpack.c.b16 %v1381, %v1379
    %v1436 = vpack.c.b16 %v1382, %v1380
    %v1437 = vpack.c.b16 %v1385, %v1383
    %v1438 = vpack.c.b16 %v1386, %v1384
    %v1439 = vpack.c.b16 %v1389, %v1387
    %v1440 = vpack.c.b16 %v1390, %v1388
    %v1441 = vpack.c.b16 %v1393, %v1391
    %v1442 = vpack.c.b16 %v1394, %v1392
    %v1443 = vpack.c.b16 %v1397, %v1395
    %v1444 = vpack.c.b16 %v1398, %v1396
    %v1445 = vpack.c.b16 %v1401, %v1399
    %v1446 = vpack.c.b16 %v1402, %v1400
    %v1447 = vpack.c.b16 %v1405, %v1403
    %v1448 = vpack.c.b16 %v1406, %v1404
    %v1449 = vpack.c.b16 %v1409, %v1407
    %v1450 = vpack.c.b16 %v1410, %v1408
    %v1451 = vpack.c.b16 %v1413, %v1411
    %v1452 = vpack.c.b16 %v1414, %v1412
    %v1453 = vpack.c.b16 %v1417, %v1415
    %v1454 = vpack.c.b16 %v1418, %v1416
    %v1455 = vpack.c.b16 %v1421, %v1419
    %v1456 = vpack.c.b16 %v1422, %v1420
    %v1457 = vpack.c.b16 %v1425, %v1423
    %v1458 = vpack.c.b16 %v1426, %v1424
    %1491 = vmatprep.subr.bf16.mxu0 %v1428
    %1492 = vmatpush1.bf16.msra.mxu0 %v1427
    %1493 = vmatprep.subr.bf16.mxu0 %v1430
    %1494 = vmatpush1.bf16.msra.mxu0 %v1429
    %1495 = vmatprep.subr.bf16.mxu0 %v1432
    %1496 = vmatpush1.bf16.msra.mxu0 %v1431
    %1497 = vmatprep.subr.bf16.mxu0 %v1434
    %1498 = vmatpush1.bf16.msra.mxu0 %v1433
    %1499 = vmatprep.subr.bf16.mxu0 %v1436
    %1500 = vmatpush1.bf16.msra.mxu0 %v1435
    %1501 = vmatprep.subr.bf16.mxu0 %v1438
    %1502 = vmatpush1.bf16.msra.mxu0 %v1437
    %1503 = vmatprep.subr.bf16.mxu0 %v1440
    %1504 = vmatpush1.bf16.msra.mxu0 %v1439
    %1505 = vmatprep.subr.bf16.mxu0 %v1442
    %1506 = vmatpush1.bf16.msra.mxu0 %v1441
    %1507 = vmatprep.subr.bf16.mxu0 %v1444
    %1508 = vmatpush1.bf16.msra.mxu0 %v1443
    %1509 = vmatprep.subr.bf16.mxu0 %v1446
    %1510 = vmatpush1.bf16.msra.mxu0 %v1445
    %1511 = vmatprep.subr.bf16.mxu0 %v1448
    %1512 = vmatpush1.bf16.msra.mxu0 %v1447
    %1513 = vmatprep.subr.bf16.mxu0 %v1450
    %1514 = vmatpush1.bf16.msra.mxu0 %v1449
    %1515 = vmatprep.subr.bf16.mxu0 %v1452
    %1516 = vmatpush1.bf16.msra.mxu0 %v1451
    %1517 = vmatprep.subr.bf16.mxu0 %v1454
    %1518 = vmatpush1.bf16.msra.mxu0 %v1453
    %1519 = vmatprep.subr.bf16.mxu0 %v1456
    %1520 = vmatpush1.bf16.msra.mxu0 %v1455
    %1521 = vmatprep.subr.bf16.mxu0 %v1458
    %1522 = vmatpush1.bf16.msra.mxu0 %v1457
    %1523 = vmatprep.mubr.bf16.mxu0 %v1285
    %1524 = vmatmul.mubr.bf16.gmra.mrb[0].mxu0 %v1284
    %v1525 = vpop.f32.mrb[0].mxu0
    %v1526 = vadd.f32 %v1324, %v1525
    %v1527 = vpop.f32.mrb[0].mxu0
    %v1528 = vadd.f32 %v1328, %v1527
    %v1529 = vpop.f32.mrb[0].mxu0
    %v1530 = vpop.f32.mrb[0].mxu0
    %1531 = vdwg.mxu0
    %1532 = vst [vmem:[#allocation10] sm:$0xff] %v1526
    %1533 = vst [vmem:[#allocation10 + $0x8] sm:$0xff] %v1528
    // Predicated region
    $region34: #{tpu_custom_call.1} parent=1 // pred_check
      _
    $region35: #{tpu_custom_call.1} parent=1 // pred_check_branch
      %1535 = sbr.rel (0) target = $region37
    $region36: #{tpu_custom_call.1} parent=1 // pred_region
      %s1537 = ssub.s32 256, 256
      %1538 = vsyncadd [#allocation4], %s1537
      %s1540 = sshll.u32 [#allocation10], 4
      %s1541 = int_to_ptr.vmem [resolvable:$true] %s1540
      %1543 = dma.vmem_to_hbm [thread:$0]  %s1541, 256, %s4, [#allocation4]
    $region37: #{tpu_custom_call.1} parent=1 // pred_fallthru
      _
    // Predicated region
    $region38: #{tpu_custom_call.1} parent=1 // pred_check
      _
    $region39: #{tpu_custom_call.1} parent=1 // pred_check_branch
      %1545 = sbr.rel (0) target = $region41
    $region40: #{tpu_custom_call.1} parent=1 // pred_region
      %1546 = dma.done [#allocation4], 256
    $region41: #{tpu_custom_call.1} parent=1 // pred_fallthru
      _
    %1547 = vsyncpa [#allocation3], 1
    %1548 = vsyncpa [#allocation6], 1
    %1549 = vsyncpa [#allocation9], 1
    %1550 = vsyncpa [#allocation4], 1

</llo_original>
